<compile_context>
chip_gen: v7x
topology: tpu7x:2x2x1
jax: 0.10.0
libtpu: 0.0.40
codegen_flags: <defaults>
</compile_context>

<pallas_src>
import jax
import jax.numpy as jnp
from jax.experimental import pallas as pl
from jax.experimental.pallas import tpu as pltpu


def _round_up(x, m):
    return (x + m - 1) // m * m


def _downsample_kernel(p_ref, w_ref, b_ref, o_ref):
    # p_ref: (K, tm)       im2col patches^T for one batch image (M on lanes)
    # w_ref: (c_out, K)    conv weight, resident across the grid
    # b_ref: (c_out, 1)    bias, broadcast along lanes
    # o_ref: (c_out, tm)   exact-size, lane-dense output block
    acc = jnp.dot(w_ref[...], p_ref[...], preferred_element_type=jnp.float32)
    o_ref[...] = (acc + b_ref[...]).astype(o_ref.dtype)


def downsample_pallas(x_nchw, weight_oihw, bias):
    """Conv2d(in_ch, in_ch + add_ch, kernel=3, stride=2, padding=1, bias=True)."""
    n, c_in, h, w = x_nchw.shape
    c_out = weight_oihw.shape[0]
    h_out = (h + 2 - 3) // 2 + 1
    w_out = (w + 2 - 3) // 2 + 1
    k_dim = 9 * c_in
    m_hw = h_out * w_out

    # ---- im2col in plain JAX (layout plumbing only; NCHW kept, no transpose) ----
    xp = jnp.pad(x_nchw, ((0, 0), (0, 0), (1, 1), (1, 1)))      # zero padding = 1
    taps = [
        xp[:, :, kh:kh + 2 * h_out - 1:2, kw:kw + 2 * w_out - 1:2]
        for kh in range(3) for kw in range(3)
    ]                                                            # each (N, C, Ho, Wo)
    patches = jnp.stack(taps, axis=2)                            # (N, C, 9, Ho, Wo)
    patches = patches.reshape(n, k_dim, m_hw)                    # K order = (c, kh, kw)

    # Weight OIHW reshape gives exactly the same (i, kh, kw) K ordering.
    w_mat = weight_oihw.reshape(c_out, k_dim)
    b_mat = bias.astype(jnp.float32).reshape(c_out, 1)

    # ---- M tiling: multiple of 128 lanes, sized from a VMEM budget ---------------
    itemsize = x_nchw.dtype.itemsize
    bytes_per_m = (k_dim + c_out) * itemsize          # one M column of patches + output
    budget = 12 * 1024 * 1024                         # double-buffered, fits v5e default
    tm_cap = max(128, (budget // (2 * bytes_per_m)) // 128 * 128)
    tm = min(tm_cap, 8192, _round_up(m_hw, 128))
    m_pad = _round_up(m_hw, tm)
    if m_pad != m_hw:
        patches = jnp.pad(patches, ((0, 0), (0, 0), (0, m_pad - m_hw)))

    out3d = pl.pallas_call(
        _downsample_kernel,
        out_shape=jax.ShapeDtypeStruct((n, c_out, m_pad), x_nchw.dtype),
        grid=(n, m_pad // tm),
        in_specs=[
            pl.BlockSpec((None, k_dim, tm), lambda b, i: (b, 0, i)),
            pl.BlockSpec((c_out, k_dim), lambda b, i: (0, 0)),
            pl.BlockSpec((c_out, 1), lambda b, i: (0, 0)),
        ],
        out_specs=pl.BlockSpec((None, c_out, tm), lambda b, i: (b, 0, i)),
        compiler_params=pltpu.CompilerParams(
            dimension_semantics=("parallel", "parallel"),
            vmem_limit_bytes=32 * 1024 * 1024,
        ),
    )(patches, w_mat, b_mat)

    # Strip M padding (no-op when m_pad == m_hw) and reshape straight to NCHW.
    return out3d[:, :, :m_hw].reshape(n, c_out, h_out, w_out)


def _reference(x_nchw, weight_oihw, bias):
    out = jax.lax.conv_general_dilated(
        x_nchw,
        weight_oihw,
        window_strides=(2, 2),
        padding=((1, 1), (1, 1)),
        dimension_numbers=("NCHW", "OIHW", "NCHW"),
    )
    return out + bias[None, :, None, None]


if __name__ == "__main__":
    # Module config: DownSample(in_channels=4, add_channels=4) -> C_out = 8.
    batch, in_ch, add_ch, spatial = 2, 4, 4, 16
    out_ch = in_ch + add_ch

    key = jax.random.PRNGKey(0)
    kx, kw, kb = jax.random.split(key, 3)
    x = jax.random.normal(kx, (batch, in_ch, spatial, spatial), dtype=jnp.float32)
    # Deterministic synthetic parameters (PyTorch Conv2d shapes: OIHW + bias).
    fan_in = in_ch * 3 * 3
    bound = 1.0 / (fan_in ** 0.5)
    weight = jax.random.uniform(
        kw, (out_ch, in_ch, 3, 3), minval=-bound, maxval=bound, dtype=jnp.float32
    )
    bias = jax.random.uniform(
        kb, (out_ch,), minval=-bound, maxval=bound, dtype=jnp.float32
    )

    fn = jax.jit(downsample_pallas)
    y = fn(x, weight, bias)
    y = jax.block_until_ready(y)

    y_ref = _reference(x, weight, bias)
    assert y.shape == (batch, out_ch, spatial // 2, spatial // 2), y.shape
    assert jnp.allclose(y, y_ref, atol=1e-4, rtol=1e-4), "mismatch vs XLA conv"

    print("KERNEL_OK")
</pallas_src>

<mosaic_0001>
module attributes {stable_mosaic.version = 11 : i64} {
  func.func @_downsample_kernel(%arg0: i32, %arg1: i32, %arg2: memref<1x36x128xf32, #tpu.memory_space<vmem>>, %arg3: memref<8x36xf32, #tpu.memory_space<vmem>>, %arg4: memref<8x1xf32, #tpu.memory_space<vmem>>, %arg5: memref<1x8x128xf32, #tpu.memory_space<vmem>>) attributes {dimension_semantics = [#tpu.dimension_semantics<parallel>, #tpu.dimension_semantics<parallel>], iteration_bounds = array<i64: 2, 1>, scalar_prefetch = 0 : i64, scratch_operands = 0 : i64, tpu.core_type = #tpu.core_type<tc>, window_params = [{transform_indices = @transform_0, window_bounds = array<i64: 1, 36, 128>}, {pipeline_mode = #tpu.pipeline_mode<synchronous>, transform_indices = @transform_1, window_bounds = array<i64: 8, 36>}, {pipeline_mode = #tpu.pipeline_mode<synchronous>, transform_indices = @transform_2, window_bounds = array<i64: 8, 1>}, {transform_indices = @transform_3, window_bounds = array<i64: 1, 8, 128>}]} {
    %c0 = arith.constant 0 : index
    %c0_0 = arith.constant 0 : index
    %0 = vector.load %arg3[%c0, %c0_0] : memref<8x36xf32, #tpu.memory_space<vmem>>, vector<8x36xf32>
    %c0_1 = arith.constant 0 : index
    %c0_2 = arith.constant 0 : index
    %c0_3 = arith.constant 0 : index
    %1 = vector.load %arg2[%c0_1, %c0_2, %c0_3] : memref<1x36x128xf32, #tpu.memory_space<vmem>>, vector<1x36x128xf32>
    %2 = vector.shape_cast %1 : vector<1x36x128xf32> to vector<36x128xf32>
    %cst = arith.constant dense<0.000000e+00> : vector<8x128xf32>
    %3 = tpu.matmul %0, %2, %cst {dimension_numbers = #tpu.dot_dimension_numbers<[1], [0], [0], [1], [0, 0, 1, 1], [], []>} : vector<8x36xf32>, vector<36x128xf32>, vector<8x128xf32> -> vector<8x128xf32>
    %c0_4 = arith.constant 0 : index
    %c0_5 = arith.constant 0 : index
    %4 = vector.load %arg4[%c0_4, %c0_5] : memref<8x1xf32, #tpu.memory_space<vmem>>, vector<8x1xf32>
    %5 = vector.broadcast %4 : vector<8x1xf32> to vector<8x128xf32>
    %6 = arith.addf %3, %5 : vector<8x128xf32>
    %c0_6 = arith.constant 0 : index
    %c0_7 = arith.constant 0 : index
    %c0_8 = arith.constant 0 : index
    %7 = vector.load %arg5[%c0_6, %c0_7, %c0_8] : memref<1x8x128xf32, #tpu.memory_space<vmem>>, vector<1x8x128xf32>
    %8 = vector.shape_cast %7 : vector<1x8x128xf32> to vector<8x128xf32>
    %9 = vector.shape_cast %6 : vector<8x128xf32> to vector<1x8x128xf32>
    tpu.vector_store %arg5[%c0_6, %c0_7, %c0_8], %9 {strides = array<i32>} : memref<1x8x128xf32, #tpu.memory_space<vmem>>, vector<1x8x128xf32>,
    return
  }
  func.func @transform_0(%arg0: i32, %arg1: i32) -> (i32, i32, i32) {
    %c0_i32 = arith.constant 0 : i32
    %c0_i32_0 = arith.constant 0 : i32
    return %arg0, %c0_i32, %arg1 : i32, i32, i32
  }
  func.func @transform_1(%arg0: i32, %arg1: i32) -> (i32, i32) {
    %c0_i32 = arith.constant 0 : i32
    %c0_i32_0 = arith.constant 0 : i32
    %c0_i32_1 = arith.constant 0 : i32
    return %c0_i32, %c0_i32_0 : i32, i32
  }
  func.func @transform_2(%arg0: i32, %arg1: i32) -> (i32, i32) {
    %c0_i32 = arith.constant 0 : i32
    %c0_i32_0 = arith.constant 0 : i32
    %c0_i32_1 = arith.constant 0 : i32
    return %c0_i32, %c0_i32_0 : i32, i32
  }
  func.func @transform_3(%arg0: i32, %arg1: i32) -> (i32, i32, i32) {
    %c0_i32 = arith.constant 0 : i32
    %c0_i32_0 = arith.constant 0 : i32
    return %arg0, %c0_i32, %arg1 : i32, i32, i32
  }
}

</mosaic_0001>

<llo_original>
// kernel: downsample_pallas.1
$region0: #{downsample_pallas.1}
  #allocation0 [shape = 'u32[]', space=smem, size = 0x4, offset = 0x4, fixed_abs, tag = 'smem constant byte address 0x4 - core index']
  #allocation1 [shape = 'u32[144,128]{1,0:T(1,128)}', space=vmem, size = 0x12000, scoped, tag = 'internal scratch']
  %s0 = inlined_call_operand.vmem [shape: f32[2,36,128], index: 0, kind: input, shape index: {}]
  %s1 = inlined_call_operand.vmem [shape: f32[8,36], index: 1, kind: input, shape index: {}]
  %s2 = inlined_call_operand.vmem [shape: f32[8,1], index: 2, kind: input, shape index: {}]
  %s3 = inlined_call_operand.vmem [shape: f32[2,8,128], index: 3, kind: output, shape index: {}]
  %s4 = sld [smem:[#allocation0]]
  $region45: #{downsample_pallas.1} parent=0
    _
  %s6 = ssub.s32 1, %s4
  %s7 = scalar_select 0, %s6, %s4
  loop: start=0, step=1, limit=4
  $region2: #{downsample_pallas.1} parent=0 // loop_pre_header
    _
  $region3: #{downsample_pallas.1} parent=0 // loop_header
    %s9 = sphi 0, %s13
    %p10 = scmp.ge.s32.totalorder %s9, 4
    %s16 = sphi 0, %s28
    %s17 = sphi 0, %s24
    %s18 = sphi 0, %s16
    %s19 = sphi 0, %s17
    %s20 = sphi 0, %s18
    %s21 = sphi 0, %s19
    %s33 = sphi 0, %s35
    %s36 = sphi 0, %s33
    %s37 = sphi 0, %s36
    %s53 = sphi 0, %s37
    %s57 = sphi 0, %s57
    %s59 = sphi 0, %s57
    %s60 = sphi 0, %s59
    %s74 = sphi 0, %s60
    %s78 = sphi 0, %s78
    %s80 = sphi 0, %s78
    %s81 = sphi 0, %s80
    %s95 = sphi 0, %s81
    %s103 = sphi 0, %s105
    %s106 = sphi 0, %s103
    %s107 = sphi 0, %s106
    %s123 = sphi 0, %s107
  $region4: #{downsample_pallas.1} parent=0 // loop_header_branch
    %12 = sbr.rel (%p10) target = $region8
  $region5: #{downsample_pallas.1} parent=0 // loop_body
    %s14 = ssub.s32 %s9, 1
    %s15 = ssub.s32 %s9, 2
    %s22 = sadd.s32 1, %s17
    %p23 = scmp.ge.s32.totalorder %s22, 1
    %s24 = scalar_select %p23, 0, %s22
    %s25 = sadd.s32 1, %s16
    %s26 = scalar_select %p23, %s25, %s16
    %p27 = scmp.ge.s32.totalorder %s26, 2
    %s28 = scalar_select %p27, 0, %s26
    %s29 = ssub.s32 %s16, %s28
    %s30 = ssub.s32 %s17, %s24
    %s31 = sor.u32 %s29, %s30
    %p32 = scmp.eq.s32.totalorder %s31, 0
    %s34 = sadd.s32 %s33, 1
    %s35 = scalar_select %p32, %s33, %s34
    %p38 = pneg %p32
    %p39 = scmp.eq.s32.totalorder %s9, 1
    %p40 = por %p38, %p39
    %p41 = scmp.ne.s32.totalorder %s33, %s36
    %p42 = scmp.eq.s32.totalorder %s9, 0
    %p43 = por %p41, %p42
    %p44 = scmp.ne.s32.totalorder %s33, %s36
    %p45 = scmp.eq.s32.totalorder %s14, 1
    %p46 = por %p44, %p45
    %p47 = scmp.ne.s32.totalorder %s36, %s37
    %p48 = scmp.eq.s32.totalorder %s14, 0
    %p49 = por %p47, %p48
    %p50 = scmp.ne.s32.totalorder %s36, %s37
    %p51 = scmp.eq.s32.totalorder %s15, 1
    %p52 = por %p50, %p51
    %p54 = scmp.ne.s32.totalorder %s37, %s53
    %p55 = scmp.eq.s32.totalorder %s15, 0
    %p56 = por %p54, %p55
    %s58 = sadd.s32 %s57, 1
    %p61 = scmp.eq.s32.totalorder %s9, 1
    %p62 = scmp.ne.s32.totalorder %s57, %s59
    %p63 = scmp.eq.s32.totalorder %s9, 0
    %p64 = por %p62, %p63
    %p65 = scmp.ne.s32.totalorder %s57, %s59
    %p66 = scmp.eq.s32.totalorder %s14, 1
    %p67 = por %p65, %p66
    %p68 = scmp.ne.s32.totalorder %s59, %s60
    %p69 = scmp.eq.s32.totalorder %s14, 0
    %p70 = por %p68, %p69
    %p71 = scmp.ne.s32.totalorder %s59, %s60
    %p72 = scmp.eq.s32.totalorder %s15, 1
    %p73 = por %p71, %p72
    %p75 = scmp.ne.s32.totalorder %s60, %s74
    %p76 = scmp.eq.s32.totalorder %s15, 0
    %p77 = por %p75, %p76
    %s79 = sadd.s32 %s78, 1
    %p82 = scmp.eq.s32.totalorder %s9, 1
    %p83 = scmp.ne.s32.totalorder %s78, %s80
    %p84 = scmp.eq.s32.totalorder %s9, 0
    %p85 = por %p83, %p84
    %p86 = scmp.ne.s32.totalorder %s78, %s80
    %p87 = scmp.eq.s32.totalorder %s14, 1
    %p88 = por %p86, %p87
    %p89 = scmp.ne.s32.totalorder %s80, %s81
    %p90 = scmp.eq.s32.totalorder %s14, 0
    %p91 = por %p89, %p90
    %p92 = scmp.ne.s32.totalorder %s80, %s81
    %p93 = scmp.eq.s32.totalorder %s15, 1
    %p94 = por %p92, %p93
    %p96 = scmp.ne.s32.totalorder %s81, %s95
    %p97 = scmp.eq.s32.totalorder %s15, 0
    %p98 = por %p96, %p97
    %s99 = ssub.s32 %s16, %s28
    %s100 = ssub.s32 %s17, %s24
    %s101 = sor.u32 %s99, %s100
    %p102 = scmp.eq.s32.totalorder %s101, 0
    %s104 = sadd.s32 %s103, 1
    %s105 = scalar_select %p102, %s103, %s104
    %p108 = pneg %p102
    %p109 = scmp.eq.s32.totalorder %s9, 1
    %p110 = por %p108, %p109
    %p111 = scmp.ne.s32.totalorder %s103, %s106
    %p112 = scmp.eq.s32.totalorder %s9, 0
    %p113 = por %p111, %p112
    %p114 = scmp.ne.s32.totalorder %s103, %s106
    %p115 = scmp.eq.s32.totalorder %s14, 1
    %p116 = por %p114, %p115
    %p117 = scmp.ne.s32.totalorder %s106, %s107
    %p118 = scmp.eq.s32.totalorder %s14, 0
    %p119 = por %p117, %p118
    %p120 = scmp.ne.s32.totalorder %s106, %s107
    %p121 = scmp.eq.s32.totalorder %s15, 1
    %p122 = por %p120, %p121
    %p124 = scmp.ne.s32.totalorder %s107, %s123
    %p125 = scmp.eq.s32.totalorder %s15, 0
    %p126 = por %p124, %p125
    %p127 = scmp.le.s32.totalorder 1, %s9
    %p128 = scmp.lt.s32.totalorder %s9, 3
    %p129 = pnand %p127, %p128
    %p130 = pneg %p129
    // Predicated region
    $region9: #{downsample_pallas.1} parent=5 // pred_check
      _
    $region10: #{downsample_pallas.1} parent=5 // pred_check_branch
      %132 = sbr.rel (%p129) target = $region12
    $region11: #{downsample_pallas.1} parent=5 // pred_region
      %s133 = ssub.s32 %s9, 1
      // Predicated region
      $region13: #{downsample_pallas.1} parent=11 // pred_check
        %p134 = pneg %p70
      $region14: #{downsample_pallas.1} parent=11 // pred_check_branch
        %136 = sbr.rel (%p134) target = $region16
      $region15: #{downsample_pallas.1} parent=11 // pred_region
        _
      $region16: #{downsample_pallas.1} parent=11 // pred_fallthru
        _
      // Predicated region
      $region17: #{downsample_pallas.1} parent=11 // pred_check
        %p137 = pneg %p91
      $region18: #{downsample_pallas.1} parent=11 // pred_check_branch
        %139 = sbr.rel (%p137) target = $region20
      $region19: #{downsample_pallas.1} parent=11 // pred_region
        _
      $region20: #{downsample_pallas.1} parent=11 // pred_fallthru
        _
    $region12: #{downsample_pallas.1} parent=5 // pred_fallthru
      _
    %p140 = scmp.lt.s32.totalorder %s9, 2
    // Predicated region
    $region21: #{downsample_pallas.1} parent=5 // pred_check
      %p141 = pneg %p140
    $region22: #{downsample_pallas.1} parent=5 // pred_check_branch
      %143 = sbr.rel (%p141) target = $region24
    $region23: #{downsample_pallas.1} parent=5 // pred_region
      // Predicated region
      $region25: #{downsample_pallas.1} parent=23 // pred_check
        %p144 = pneg %p43
      $region26: #{downsample_pallas.1} parent=23 // pred_check_branch
        %146 = sbr.rel (%p144) target = $region28
      $region27: #{downsample_pallas.1} parent=23 // pred_region
        %p147 = scmp.lt.s32.totalorder %s16, 1
        %s148 = scalar_select %p147, %s16, 1
        %p149 = scmp.lt.s32.totalorder %s17, 0
        %s150 = scalar_select %p149, %s17, 0
        %s151 = smul.addr %s148, 5
        %s152 = sadd.s32 %s150, %s151
        %s153 = smul.addr %s152, 8
        %s154 = scalar_lea.vmem %s0, %s153
      $region28: #{downsample_pallas.1} parent=23 // pred_fallthru
        _
    $region24: #{downsample_pallas.1} parent=5 // pred_fallthru
      _
    %p155 = scmp.le.s32.totalorder 1, %s9
    %p156 = scmp.lt.s32.totalorder %s9, 3
    %p157 = pnand %p155, %p156
    %p158 = pneg %p157
    // Predicated region
    $region29: #{downsample_pallas.1} parent=5 // pred_check
      _
    $region30: #{downsample_pallas.1} parent=5 // pred_check_branch
      %160 = sbr.rel (%p157) target = $region32
    $region31: #{downsample_pallas.1} parent=5 // pred_region
      %s161 = ssub.s32 %s9, 1
      %p162 = scmp.lt.s32.totalorder %s18, 1
      %s163 = scalar_select %p162, %s18, 1
      %p164 = scmp.lt.s32.totalorder %s19, 0
      %s165 = scalar_select %p164, %s19, 0
      %s166 = smul.addr %s163, 5
      %s167 = sadd.s32 %s165, %s166
      %s168 = smul.addr %s167, 8
      %s169 = scalar_lea.vmem %s0, %s168
      %p170 = pneg %p49
      %p171 = pneg %p46
      %p172 = pneg %p70
      %p173 = pneg %p67
      %p174 = pneg %p91
      %p175 = pneg %p88
      %p176 = pneg %p119
      %p177 = pneg %p116
      %p178 = scmp.lt.s32.totalorder %s18, 1
      %s179 = scalar_select %p178, %s18, 1
      %p180 = scmp.lt.s32.totalorder %s19, 0
      %s181 = scalar_select %p180, %s19, 0
      %s182 = sadd.s32 %s181, %s179
      %s183 = smul.addr %s182, 8
      %s184 = scalar_lea.vmem %s3, %s183
      %p185 = scmp.lt.s32.totalorder %s18, 1
      %s186 = scalar_select %p185, %s18, 1
      %p187 = scmp.lt.s32.totalorder %s19, 0
      %s188 = scalar_select %p187, %s19, 0
      %s189 = smul.addr %s186, 5
      %s190 = sadd.s32 %s188, %s189
      %s191 = smul.addr %s190, 8
      %s192 = scalar_lea.vmem %s0, %s191
      %p193 = scmp.lt.s32.totalorder %s18, 1
      %s194 = scalar_select %p193, %s18, 1
      %p195 = scmp.lt.s32.totalorder %s19, 0
      %s196 = scalar_select %p195, %s19, 0
      %s197 = sadd.s32 %s196, %s194
      %s198 = smul.addr %s197, 8
      %s199 = scalar_lea.vmem %s3, %s198
      %v200 = vld [vmem:[%s1] sm:$0xff]
      %v201 = vld [vmem:[%s192] sm:$0xff]
      %v202 = vld [vmem:[%s192 + $0x8] sm:$0xff]
      %v203 = vld [vmem:[%s192 + $0x10] sm:$0xff]
      %v204 = vld [vmem:[%s192 + $0x18] sm:$0xff]
      %v205 = vld [vmem:[%s192 + $0x20] sm:$0xf]
      %v206 = vld [vmem:[%s2] sm:$0xff]
      %208 = vset.pattern.permute.xlu0 0
      %209 = vperm.xlu0 %208, %v206
      %v210 = vpop.permute.xlu0 %209
      %vm212 = vcmask 293888
      %v214 = vsel %vm212, %v200, 0
      %vm216 = vcmask 1043456
      %v218 = vsel %vm216, %v205, 0
      %220 = vmatprep.subr.mxu0 0.0
      %221 = vmatpush1.msra.mxu0 %v201
      %222 = vmatprep.subr.mxu0 0.0
      %223 = vmatpush1.msra.mxu0 %v202
      %224 = vmatprep.subr.mxu0 0.0
      %225 = vmatpush1.msra.mxu0 %v203
      %226 = vmatprep.subr.mxu0 0.0
      %227 = vmatpush1.msra.mxu0 %v204
      %228 = vmatprep.subr.mxu0 0.0
      %229 = vmatpush1.msra.mxu0 %v218
      %230 = vmatprep.subr.mxu0 0.0
      %231 = vmatpush1.msra.mxu0 0.0
      %232 = vmatprep.subr.mxu0 0.0
      %233 = vmatpush1.msra.mxu0 0.0
      %234 = vmatprep.subr.mxu0 0.0
      %235 = vmatpush1.msra.mxu0 0.0
      %236 = vmatprep.subr.mxu0 0.0
      %237 = vmatpush1.msra.mxu0 0.0
      %238 = vmatprep.subr.mxu0 0.0
      %239 = vmatpush1.msra.mxu0 0.0
      %240 = vmatprep.subr.mxu0 0.0
      %241 = vmatpush1.msra.mxu0 0.0
      %242 = vmatprep.subr.mxu0 0.0
      %243 = vmatpush1.msra.mxu0 0.0
      %244 = vmatprep.subr.mxu0 0.0
      %245 = vmatpush1.msra.mxu0 0.0
      %246 = vmatprep.subr.mxu0 0.0
      %247 = vmatpush1.msra.mxu0 0.0
      %248 = vmatprep.subr.mxu0 0.0
      %249 = vmatpush1.msra.mxu0 0.0
      %250 = vmatprep.subr.mxu0 0.0
      %251 = vmatpush1.msra.mxu0 0.0
      %252 = vmatprep.subr.mxu0 0.0
      %253 = vmatpush1.msra.mxu0 0.0
      %254 = vmatprep.subr.mxu0 0.0
      %255 = vmatpush1.msra.mxu0 0.0
      %256 = vmatprep.subr.mxu0 0.0
      %257 = vmatpush1.msra.mxu0 0.0
      %258 = vmatprep.subr.mxu0 0.0
      %259 = vmatpush1.msra.mxu0 0.0
      %260 = vmatprep.subr.mxu0 0.0
      %261 = vmatpush1.msra.mxu0 0.0
      %262 = vmatprep.subr.mxu0 0.0
      %263 = vmatpush1.msra.mxu0 0.0
      %264 = vmatprep.subr.mxu0 0.0
      %265 = vmatpush1.msra.mxu0 0.0
      %266 = vmatprep.subr.mxu0 0.0
      %267 = vmatpush1.msra.mxu0 0.0
      %268 = vmatprep.subr.mxu0 0.0
      %269 = vmatpush1.msra.mxu0 0.0
      %270 = vmatprep.subr.mxu0 0.0
      %271 = vmatpush1.msra.mxu0 0.0
      %272 = vmatprep.subr.mxu0 0.0
      %273 = vmatpush1.msra.mxu0 0.0
      %274 = vmatprep.subr.mxu0 0.0
      %275 = vmatpush1.msra.mxu0 0.0
      %276 = vmatprep.subr.mxu0 0.0
      %277 = vmatpush1.msra.mxu0 0.0
      %278 = vmatprep.subr.mxu0 0.0
      %279 = vmatpush1.msra.mxu0 0.0
      %280 = vmatprep.subr.mxu0 0.0
      %281 = vmatpush1.msra.mxu0 0.0
      %282 = vmatprep.subr.mxu0 0.0
      %283 = vmatpush1.msra.mxu0 0.0
      %284 = vmatprep.mubr.f32.mxu0 0.0
      %285 = vmatmul.mubr.f32.gmra.mrb[0].mxu0 %v214
      %v286 = vpop.f32.mrb[0].mxu0
      %v287 = vadd.f32 %v210, %v286
      %v288 = vpop.f32.mrb[0].mxu0
      %289 = vdwg.mxu0
      %290 = vst [vmem:[%s199] sm:$0xff] %v287
      %p291 = scmp.lt.s32.totalorder %s18, 1
      %s292 = scalar_select %p291, %s18, 1
      %p293 = scmp.lt.s32.totalorder %s19, 0
      %s294 = scalar_select %p293, %s19, 0
      %s295 = sadd.s32 %s294, %s292
      %s296 = smul.addr %s295, 8
      %s297 = scalar_lea.vmem %s3, %s296
      // Predicated region
      $region33: #{downsample_pallas.1} parent=31 // pred_check
        %p298 = pneg %p116
      $region34: #{downsample_pallas.1} parent=31 // pred_check_branch
        %300 = sbr.rel (%p298) target = $region36
      $region35: #{downsample_pallas.1} parent=31 // pred_region
        _
      $region36: #{downsample_pallas.1} parent=31 // pred_fallthru
        _
    $region32: #{downsample_pallas.1} parent=5 // pred_fallthru
      _
    %p301 = scmp.le.s32.totalorder 2, %s9
    // Predicated region
    $region37: #{downsample_pallas.1} parent=5 // pred_check
      %p302 = pneg %p301
    $region38: #{downsample_pallas.1} parent=5 // pred_check_branch
      %304 = sbr.rel (%p302) target = $region40
    $region39: #{downsample_pallas.1} parent=5 // pred_region
      %s305 = ssub.s32 %s9, 2
      // Predicated region
      $region41: #{downsample_pallas.1} parent=39 // pred_check
        %p306 = pneg %p122
      $region42: #{downsample_pallas.1} parent=39 // pred_check_branch
        %308 = sbr.rel (%p306) target = $region44
      $region43: #{downsample_pallas.1} parent=39 // pred_region
        %p309 = scmp.lt.s32.totalorder %s20, 1
        %s310 = scalar_select %p309, %s20, 1
        %p311 = scmp.lt.s32.totalorder %s21, 0
        %s312 = scalar_select %p311, %s21, 0
        %s313 = sadd.s32 %s312, %s310
        %s314 = smul.addr %s313, 8
        %s315 = scalar_lea.vmem %s3, %s314
      $region44: #{downsample_pallas.1} parent=39 // pred_fallthru
        _
    $region40: #{downsample_pallas.1} parent=5 // pred_fallthru
      _
  $region6: #{downsample_pallas.1} parent=0 // loop_footer
    %s13 = sadd.s32 1, %s9
  $region7: #{downsample_pallas.1} parent=0 // loop_footer_branch
    %8 = sbr.rel target = $region3
  $region8: #{downsample_pallas.1} parent=0 // loop_exit
    _

</llo_original>
